<compile_context>
chip_gen: v5e
topology: v5e:2x2
jax: 0.10.0
libtpu: 0.0.40
codegen_flags: <defaults>
</compile_context>

<pallas_src>
import jax
import jax.numpy as jnp
from jax.experimental import pallas as pl
from jax.experimental.pallas import tpu as pltpu

_LANES = 128
_CHUNK = 8 * _LANES          # 1024: keeps the (rows, 128) view with rows % 8 == 0
_MIN_PALLAS_ELEMS = 4096     # below this, launch/layout overhead dominates


def _logreg_kernel(w_ref, b_ref, x_ref, o_ref):
    # w_ref / b_ref: SMEM f32[1] scalars holding 0.5*w and 0.5*b.
    # x_ref / o_ref: (block_rows, 128) VMEM tiles (lane-dense, full-width stores).
    # sigmoid(z) = 0.5 * tanh(z / 2) + 0.5  -> one EUP op, numerically safe.
    half_z = x_ref[...] * w_ref[0] + b_ref[0]        # VPU fma
    o_ref[...] = 0.5 * jnp.tanh(half_z) + 0.5        # EUP tanh + VPU fma


def _pallas_sigmoid_linear(x_flat, w_half, b_half, *, block_rows):
    """x_flat: (n_main,) with n_main % 1024 == 0. Returns sigmoid(w*x+b), (n_main,)."""
    n_main = x_flat.shape[0]
    rows = n_main // _LANES                  # multiple of 8 by construction
    x2d = x_flat.reshape(rows, _LANES)       # lane-dense view; contiguous, no copy

    br = min(block_rows, rows)
    # If the whole stream fits in one block, split into 2 so a v7x chip can
    # shard the "parallel" grid axis across both TensorCores.
    if br == rows and rows >= 16 and rows % 16 == 0:
        br = rows // 2
    # Keep every block full-size (no masked vst on an edge block).
    while rows % br != 0:
        br -= 8
    num_blocks = rows // br

    out2d = pl.pallas_call(
        _logreg_kernel,
        out_shape=jax.ShapeDtypeStruct((rows, _LANES), x_flat.dtype),
        grid=(num_blocks,),
        in_specs=[
            pl.BlockSpec(memory_space=pltpu.MemorySpace.SMEM),   # 0.5 * w
            pl.BlockSpec(memory_space=pltpu.MemorySpace.SMEM),   # 0.5 * b
            pl.BlockSpec((br, _LANES), lambda i: (i, 0)),        # lane-dense x
        ],
        out_specs=pl.BlockSpec((br, _LANES), lambda i: (i, 0)),
        compiler_params=pltpu.CompilerParams(
            dimension_semantics=("parallel",),
            # 2 MiB tiles, double-buffered in+out = 8 MiB; be explicit so the
            # v5e 16 MiB default scoped-VMEM limit never becomes a cliff.
            vmem_limit_bytes=32 * 1024 * 1024,
        ),
    )(w_half, b_half, x2d)
    return out2d.reshape(n_main)             # contiguous reshape, no copy


def logistic_regression_forward(x, weight, bias, *, block_rows=4096,
                                min_pallas_elems=_MIN_PALLAS_ELEMS):
    """x: (N, 1), weight: (1, 1), bias: (1,) -> sigmoid(x @ W^T + b), (N, 1)."""
    n, in_features = x.shape
    assert in_features == 1, "LogisticRegressionModel uses nn.Linear(1, 1)"
    dtype = x.dtype

    w = weight.reshape(()).astype(jnp.float32)
    b = bias.reshape(()).astype(jnp.float32)

    # Small-N fast path: a single (8,128) block is launch-dominated; plain XLA wins.
    if n < min_pallas_elems:
        return jax.nn.sigmoid(x * w + b).astype(dtype)

    # SMEM scalars with the 0.5 tanh factor folded in (explicit f32).
    w_half = (0.5 * w).reshape(1)
    b_half = (0.5 * b).reshape(1)

    x_flat = x.reshape(n)
    n_main = (n // _CHUNK) * _CHUNK

    y_main = _pallas_sigmoid_linear(x_flat[:n_main], w_half, b_half,
                                    block_rows=block_rows)
    if n_main == n:
        return y_main.reshape(n, 1)

    # Ragged tail (< 1024 elements): cheaper in plain XLA than a padded block.
    y_tail = jax.nn.sigmoid(x_flat[n_main:] * w + b).astype(dtype)
    return jnp.concatenate([y_main, y_tail]).reshape(n, 1)


if __name__ == "__main__":
    key = jax.random.PRNGKey(0)
    k_w, k_b = jax.random.split(key)

    # torch.nn.Linear(1, 1) init: U(-1/sqrt(1), 1/sqrt(1)).
    weight = jax.random.uniform(k_w, (1, 1), jnp.float32, minval=-1.0, maxval=1.0)
    bias = jax.random.uniform(k_b, (1,), jnp.float32, minval=-1.0, maxval=1.0)

    # 1) Spec-sized input: x = np.linspace(0, 10, 200) -> (200, 1); fast path.
    n_small = 200
    x_small = jnp.linspace(0.0, 10.0, n_small, dtype=jnp.float32).reshape(n_small, 1)
    y_small = jax.block_until_ready(
        logistic_regression_forward(x_small, weight, bias))
    ref_small = jax.nn.sigmoid(x_small @ weight.T + bias)
    assert y_small.shape == (n_small, 1)
    assert jnp.allclose(y_small, ref_small, atol=1e-6, rtol=1e-6), "small-N mismatch"

    # 2) Slightly larger input that exercises the Pallas kernel: 4096 lane-dense
    #    main elements (2 grid blocks) + a 200-element ragged tail.
    n_big = 4096 + 200
    x_big = jnp.linspace(-10.0, 10.0, n_big, dtype=jnp.float32).reshape(n_big, 1)
    y_big = jax.block_until_ready(
        logistic_regression_forward(x_big, weight, bias, min_pallas_elems=0))
    ref_big = jax.nn.sigmoid(x_big @ weight.T + bias)
    assert y_big.shape == (n_big, 1)
    assert jnp.allclose(y_big, ref_big, atol=1e-5, rtol=1e-5), "pallas mismatch"

    print("KERNEL_OK")
</pallas_src>

<mosaic_0001>
module attributes {stable_mosaic.version = 11 : i64} {
  func.func @_logreg_kernel(%arg0: i32, %arg1: memref<1xf32, #tpu.memory_space<smem>>, %arg2: memref<1xf32, #tpu.memory_space<smem>>, %arg3: memref<16x128xf32, #tpu.memory_space<vmem>>, %arg4: memref<16x128xf32, #tpu.memory_space<vmem>>) attributes {dimension_semantics = [#tpu.dimension_semantics<parallel>], iteration_bounds = array<i64: 2>, scalar_prefetch = 0 : i64, scratch_operands = 0 : i64, tpu.core_type = #tpu.core_type<tc>, window_params = [{transform_indices = @transform_0, window_bounds = array<i64: 1>}, {transform_indices = @transform_1, window_bounds = array<i64: 1>}, {transform_indices = @transform_2, window_bounds = array<i64: 16, 128>}, {transform_indices = @transform_3, window_bounds = array<i64: 16, 128>}]} {
    %c0 = arith.constant 0 : index
    %c0_0 = arith.constant 0 : index
    %0 = vector.load %arg3[%c0, %c0_0] : memref<16x128xf32, #tpu.memory_space<vmem>>, vector<16x128xf32>
    %c0_1 = arith.constant 0 : index
    %1 = memref.load %arg1[%c0_1] : memref<1xf32, #tpu.memory_space<smem>>
    %2 = vector.broadcast %1 : f32 to vector<16x128xf32>
    %3 = arith.mulf %0, %2 : vector<16x128xf32>
    %c0_2 = arith.constant 0 : index
    %4 = memref.load %arg2[%c0_2] : memref<1xf32, #tpu.memory_space<smem>>
    %5 = vector.broadcast %4 : f32 to vector<16x128xf32>
    %6 = arith.addf %3, %5 : vector<16x128xf32>
    %7 = math.tanh %6 : vector<16x128xf32>
    %cst = arith.constant 5.000000e-01 : f32
    %8 = vector.broadcast %cst : f32 to vector<16x128xf32>
    %9 = arith.mulf %8, %7 : vector<16x128xf32>
    %cst_3 = arith.constant 5.000000e-01 : f32
    %10 = vector.broadcast %cst_3 : f32 to vector<16x128xf32>
    %11 = arith.addf %9, %10 : vector<16x128xf32>
    %c0_4 = arith.constant 0 : index
    %c0_5 = arith.constant 0 : index
    %12 = vector.load %arg4[%c0_4, %c0_5] : memref<16x128xf32, #tpu.memory_space<vmem>>, vector<16x128xf32>
    tpu.vector_store %arg4[%c0_4, %c0_5], %11 {strides = array<i32>} : memref<16x128xf32, #tpu.memory_space<vmem>>, vector<16x128xf32>,
    return
  }
  func.func @transform_0(%arg0: i32) -> i32 {
    %c0_i32 = arith.constant 0 : i32
    %c0_i32_0 = arith.constant 0 : i32
    return %c0_i32 : i32
  }
  func.func @transform_1(%arg0: i32) -> i32 {
    %c0_i32 = arith.constant 0 : i32
    %c0_i32_0 = arith.constant 0 : i32
    return %c0_i32 : i32
  }
  func.func @transform_2(%arg0: i32) -> (i32, i32) {
    %c0_i32 = arith.constant 0 : i32
    %c0_i32_0 = arith.constant 0 : i32
    return %arg0, %c0_i32 : i32, i32
  }
  func.func @transform_3(%arg0: i32) -> (i32, i32) {
    %c0_i32 = arith.constant 0 : i32
    %c0_i32_0 = arith.constant 0 : i32
    return %arg0, %c0_i32 : i32, i32
  }
}

</mosaic_0001>

<llo_original>
// kernel: tpu_custom_call.1
$region0: #{tpu_custom_call.1}
  #allocation0 [shape = 'u32[]', space=smem, size = 0x4, offset = 0x4, fixed_abs, tag = 'smem constant byte address 0x4 - core index']
  #allocation1 [shape = 'u32[72,128]{1,0:T(1,128)}', space=vmem, size = 0x9000, scoped, tag = 'internal scratch']
  #allocation2 [shape = 'f32[1]{0:T(128)S(6)}', space=smem, size = 0x200, scoped, tag = 'scoped memory for tpu_custom_call.1']
  #allocation3 [shape = 'f32[1]{0:T(128)S(6)}', space=smem, size = 0x200, scoped, tag = 'scoped memory for tpu_custom_call.1']
  %s0 = inlined_call_operand.<no memory space> [shape: f32[1], index: 0, kind: input, shape index: {}]
  %s1 = inlined_call_operand.<no memory space> [shape: f32[1], index: 1, kind: input, shape index: {}]
  %s2 = inlined_call_operand.hbm [shape: f32[32,128], index: 2, kind: input, shape index: {}]
  %s3 = inlined_call_operand.hbm [shape: f32[32,128], index: 3, kind: output, shape index: {}]
  %s4 = sld [smem:[#allocation0]]
  $region49: #{tpu_custom_call.1} parent=0
    _
  %s6 = ssub.s32 1, %s4
  %s7 = scalar_select 0, %s6, %s4
  %8 = sst [smem:[#allocation2]] %s0
  %9 = sst [smem:[#allocation3]] %s1
  $region1: #{tpu_custom_call.1} parent=0
    #allocation4 [shape = 'u8[16384]{0}', space=vmem, size = 0x4000, scoped, tag = 'input window, operand 2']
    #allocation5 [shape = 's32[2]{0}', space=sflag, size = 0x8, scoped, tag = 'scoped memory for tpu_custom_call.1']
    #allocation6 [shape = 's32[2]{0}', space=sflag, size = 0x8, scoped, tag = 'scoped memory for tpu_custom_call.1']
    #allocation7 [shape = 'u8[16384]{0}', space=vmem, size = 0x4000, scoped, tag = 'output window, operand 0']
    %10 = vsyncpa [#allocation5], 0
    %s11 = scalar_lea.sflag [#allocation5], 1
    %12 = vsyncpa %s11, 0
    %13 = vsyncpa [#allocation6], 0
    %s14 = scalar_lea.sflag [#allocation6], 1
    %15 = vsyncpa %s14, 0
    loop: start=0, step=1, limit=4
    $region2: #{tpu_custom_call.1} parent=1 // loop_pre_header
      _
    $region3: #{tpu_custom_call.1} parent=1 // loop_header
      %s17 = sphi 0, %s21
      %p18 = scmp.ge.s32.totalorder %s17, 4
      %s25 = sphi 0, %s25
      %s27 = sphi 0, %s25
      %s28 = sphi 0, %s27
      %s42 = sphi 0, %s28
      %s46 = sphi 0, %s46
      %s48 = sphi 0, %s46
      %s49 = sphi 0, %s48
      %s63 = sphi 0, %s49
      %s69 = sphi 0, %s71
      %s72 = sphi 0, %s69
      %s73 = sphi 0, %s72
      %s89 = sphi 0, %s73
      %s95 = sphi 0, %s97
      %s98 = sphi 0, %s95
      %s99 = sphi 0, %s98
      %s115 = sphi 0, %s99
    $region4: #{tpu_custom_call.1} parent=1 // loop_header_branch
      %20 = sbr.rel (%p18) target = $region8
    $region5: #{tpu_custom_call.1} parent=1 // loop_body
      %s22 = ssub.s32 %s17, 1
      %s23 = ssub.s32 %s17, 2
      %s24 = sadd.s32 %s17, 1
      %s26 = sadd.s32 %s25, 1
      %p29 = scmp.eq.s32.totalorder %s17, 1
      %p30 = scmp.ne.s32.totalorder %s25, %s27
      %p31 = scmp.eq.s32.totalorder %s17, 0
      %p32 = por %p30, %p31
      %p33 = scmp.ne.s32.totalorder %s25, %s27
      %p34 = scmp.eq.s32.totalorder %s22, 1
      %p35 = por %p33, %p34
      %p36 = scmp.ne.s32.totalorder %s27, %s28
      %p37 = scmp.eq.s32.totalorder %s22, 0
      %p38 = por %p36, %p37
      %p39 = scmp.ne.s32.totalorder %s27, %s28
      %p40 = scmp.eq.s32.totalorder %s23, 1
      %p41 = por %p39, %p40
      %p43 = scmp.ne.s32.totalorder %s28, %s42
      %p44 = scmp.eq.s32.totalorder %s23, 0
      %p45 = por %p43, %p44
      %s47 = sadd.s32 %s46, 1
      %p50 = scmp.eq.s32.totalorder %s17, 1
      %p51 = scmp.ne.s32.totalorder %s46, %s48
      %p52 = scmp.eq.s32.totalorder %s17, 0
      %p53 = por %p51, %p52
      %p54 = scmp.ne.s32.totalorder %s46, %s48
      %p55 = scmp.eq.s32.totalorder %s22, 1
      %p56 = por %p54, %p55
      %p57 = scmp.ne.s32.totalorder %s48, %s49
      %p58 = scmp.eq.s32.totalorder %s22, 0
      %p59 = por %p57, %p58
      %p60 = scmp.ne.s32.totalorder %s48, %s49
      %p61 = scmp.eq.s32.totalorder %s23, 1
      %p62 = por %p60, %p61
      %p64 = scmp.ne.s32.totalorder %s49, %s63
      %p65 = scmp.eq.s32.totalorder %s23, 0
      %p66 = por %p64, %p65
      %s67 = ssub.s32 %s17, %s24
      %p68 = scmp.eq.s32.totalorder %s67, 0
      %s70 = sadd.s32 %s69, 1
      %s71 = scalar_select %p68, %s69, %s70
      %p74 = pneg %p68
      %p75 = scmp.eq.s32.totalorder %s17, 1
      %p76 = por %p74, %p75
      %p77 = scmp.ne.s32.totalorder %s69, %s72
      %p78 = scmp.eq.s32.totalorder %s17, 0
      %p79 = por %p77, %p78
      %p80 = scmp.ne.s32.totalorder %s69, %s72
      %p81 = scmp.eq.s32.totalorder %s22, 1
      %p82 = por %p80, %p81
      %p83 = scmp.ne.s32.totalorder %s72, %s73
      %p84 = scmp.eq.s32.totalorder %s22, 0
      %p85 = por %p83, %p84
      %p86 = scmp.ne.s32.totalorder %s72, %s73
      %p87 = scmp.eq.s32.totalorder %s23, 1
      %p88 = por %p86, %p87
      %p90 = scmp.ne.s32.totalorder %s73, %s89
      %p91 = scmp.eq.s32.totalorder %s23, 0
      %p92 = por %p90, %p91
      %s93 = ssub.s32 %s17, %s24
      %p94 = scmp.eq.s32.totalorder %s93, 0
      %s96 = sadd.s32 %s95, 1
      %s97 = scalar_select %p94, %s95, %s96
      %p100 = pneg %p94
      %p101 = scmp.eq.s32.totalorder %s17, 1
      %p102 = por %p100, %p101
      %p103 = scmp.ne.s32.totalorder %s95, %s98
      %p104 = scmp.eq.s32.totalorder %s17, 0
      %p105 = por %p103, %p104
      %p106 = scmp.ne.s32.totalorder %s95, %s98
      %p107 = scmp.eq.s32.totalorder %s22, 1
      %p108 = por %p106, %p107
      %p109 = scmp.ne.s32.totalorder %s98, %s99
      %p110 = scmp.eq.s32.totalorder %s22, 0
      %p111 = por %p109, %p110
      %p112 = scmp.ne.s32.totalorder %s98, %s99
      %p113 = scmp.eq.s32.totalorder %s23, 1
      %p114 = por %p112, %p113
      %p116 = scmp.ne.s32.totalorder %s99, %s115
      %p117 = scmp.eq.s32.totalorder %s23, 0
      %p118 = por %p116, %p117
      %p119 = scmp.le.s32.totalorder 1, %s17
      %p120 = scmp.lt.s32.totalorder %s17, 3
      %p121 = pnand %p119, %p120
      %p122 = pneg %p121
      // Predicated region
      $region9: #{tpu_custom_call.1} parent=5 // pred_check
        _
      $region10: #{tpu_custom_call.1} parent=5 // pred_check_branch
        %124 = sbr.rel (%p121) target = $region12
      $region11: #{tpu_custom_call.1} parent=5 // pred_region
        %s125 = ssub.s32 %s17, 1
        // Predicated region
        $region13: #{tpu_custom_call.1} parent=11 // pred_check
          %p126 = pneg %p38
        $region14: #{tpu_custom_call.1} parent=11 // pred_check_branch
          %128 = sbr.rel (%p126) target = $region16
        $region15: #{tpu_custom_call.1} parent=11 // pred_region
          _
        $region16: #{tpu_custom_call.1} parent=11 // pred_fallthru
          _
        // Predicated region
        $region17: #{tpu_custom_call.1} parent=11 // pred_check
          %p129 = pneg %p59
        $region18: #{tpu_custom_call.1} parent=11 // pred_check_branch
          %131 = sbr.rel (%p129) target = $region20
        $region19: #{tpu_custom_call.1} parent=11 // pred_region
          _
        $region20: #{tpu_custom_call.1} parent=11 // pred_fallthru
          _
      $region12: #{tpu_custom_call.1} parent=5 // pred_fallthru
        _
      %p132 = scmp.lt.s32.totalorder %s17, 2
      // Predicated region
      $region21: #{tpu_custom_call.1} parent=5 // pred_check
        %p133 = pneg %p132
      $region22: #{tpu_custom_call.1} parent=5 // pred_check_branch
        %135 = sbr.rel (%p133) target = $region24
      $region23: #{tpu_custom_call.1} parent=5 // pred_region
        // Predicated region
        $region25: #{tpu_custom_call.1} parent=23 // pred_check
          %p136 = pneg %p79
        $region26: #{tpu_custom_call.1} parent=23 // pred_check_branch
          %138 = sbr.rel (%p136) target = $region28
        $region27: #{tpu_custom_call.1} parent=23 // pred_region
          %s139 = sand.u32 %s69, 1
          %s140 = scalar_lea.sflag [#allocation5], %s139
          %s141 = sand.u32 %s69, 1
          %s142 = smul.addr %s141, 16
          %s143 = scalar_lea.vmem [#allocation4], %s142
          %s144 = smul.u32 2, %s17
          %146 = vsyncadd %s140, 0
          %s147 = smul.addr %s144, 8
          %s148 = scalar_lea.hbm %s2, %s147
          %s149 = sshll.u32 %s148, 4
          %s150 = int_to_ptr.hbm [resolvable:$true] %s149
          %s151 = sshll.u32 %s143, 4
          %s152 = int_to_ptr.vmem [resolvable:$true] %s151
          %157 = dma.hbm_to_vmem [thread:$0]  %s150, 256, %s152, %s140, 128, 128, 8
        $region28: #{tpu_custom_call.1} parent=23 // pred_fallthru
          _
      $region24: #{tpu_custom_call.1} parent=5 // pred_fallthru
        _
      %p158 = scmp.le.s32.totalorder 1, %s17
      %p159 = scmp.lt.s32.totalorder %s17, 3
      %p160 = pnand %p158, %p159
      %p161 = pneg %p160
      // Predicated region
      $region29: #{tpu_custom_call.1} parent=5 // pred_check
        _
      $region30: #{tpu_custom_call.1} parent=5 // pred_check_branch
        %163 = sbr.rel (%p160) target = $region32
      $region31: #{tpu_custom_call.1} parent=5 // pred_region
        %s164 = ssub.s32 %s17, 1
        %s165 = sand.u32 %s72, 1
        %s166 = scalar_lea.sflag [#allocation5], %s165
        %s167 = sand.u32 %s72, 1
        %s168 = smul.addr %s167, 16
        %s169 = scalar_lea.vmem [#allocation4], %s168
        // Predicated region
        $region33: #{tpu_custom_call.1} parent=31 // pred_check
          %p170 = pneg %p85
        $region34: #{tpu_custom_call.1} parent=31 // pred_check_branch
          %172 = sbr.rel (%p170) target = $region36
        $region35: #{tpu_custom_call.1} parent=31 // pred_region
          %174 = dma.done %s166, 256
        $region36: #{tpu_custom_call.1} parent=31 // pred_fallthru
          _
        %p175 = pneg %p38
        %p176 = pneg %p35
        %p177 = pneg %p59
        %p178 = pneg %p56
        %s179 = sand.u32 %s72, 1
        %s180 = scalar_lea.sflag [#allocation5], %s179
        %s181 = sand.u32 %s72, 1
        %s182 = smul.addr %s181, 16
        %s183 = scalar_lea.vmem [#allocation4], %s182
        %p184 = pneg %p85
        %p185 = pneg %p82
        %p186 = pneg %p111
        %p187 = pneg %p108
        %s188 = sand.u32 %s98, 1
        %s189 = scalar_lea.sflag [#allocation6], %s188
        %s190 = sand.u32 %s98, 1
        %s191 = smul.addr %s190, 16
        %s192 = scalar_lea.vmem [#allocation7], %s191
        %s193 = smul.u32 2, %s22
        %s194 = smul.u32 2, %s22
        %v195 = vld [vmem:[%s169] sm:$0xff]
        %v196 = vld [vmem:[%s169 + $0x8] sm:$0xff]
        %s197 = sld [smem:[#allocation2]]
        %v198 = vstv %s197
        %v199 = vmul.f32 %v195, %v198
        %v200 = vmul.f32 %v196, %v198
        %s201 = sld [smem:[#allocation3]]
        %v202 = vstv %s201
        %v203 = vadd.f32 %v199, %v202
        %v204 = vadd.f32 %v200, %v202
        %v205 = vtanh.pop %v203
        %v206 = vtanh.pop %v204
        %v207 = vmul.f32 %v205, 0.5
        %v208 = vmul.f32 %v206, 0.5
        %v209 = vadd.f32 %v207, 0.5
        %v210 = vadd.f32 %v208, 0.5
        %211 = vst [vmem:[%s192] sm:$0xff] %v209
        %212 = vst [vmem:[%s192 + $0x8] sm:$0xff] %v210
        %s213 = sand.u32 %s98, 1
        %s214 = scalar_lea.sflag [#allocation6], %s213
        %s215 = sand.u32 %s98, 1
        %s216 = smul.addr %s215, 16
        %s217 = scalar_lea.vmem [#allocation7], %s216
        // Predicated region
        $region37: #{tpu_custom_call.1} parent=31 // pred_check
          %p218 = pneg %p108
        $region38: #{tpu_custom_call.1} parent=31 // pred_check_branch
          %220 = sbr.rel (%p218) target = $region40
        $region39: #{tpu_custom_call.1} parent=31 // pred_region
          %s221 = smul.u32 2, %s22
          %223 = vsyncadd %s214, 0
          %s224 = smul.addr %s221, 8
          %s225 = scalar_lea.hbm %s3, %s224
          %s226 = sshll.u32 %s217, 4
          %s227 = int_to_ptr.vmem [resolvable:$true] %s226
          %s228 = sshll.u32 %s225, 4
          %s229 = int_to_ptr.hbm [resolvable:$true] %s228
          %234 = dma.vmem_to_hbm [thread:$0]  %s227, 256, %s229, %s214, 128, 128, 8
        $region40: #{tpu_custom_call.1} parent=31 // pred_fallthru
          _
      $region32: #{tpu_custom_call.1} parent=5 // pred_fallthru
        _
      %p235 = scmp.le.s32.totalorder 2, %s17
      // Predicated region
      $region41: #{tpu_custom_call.1} parent=5 // pred_check
        %p236 = pneg %p235
      $region42: #{tpu_custom_call.1} parent=5 // pred_check_branch
        %238 = sbr.rel (%p236) target = $region44
      $region43: #{tpu_custom_call.1} parent=5 // pred_region
        %s239 = ssub.s32 %s17, 2
        // Predicated region
        $region45: #{tpu_custom_call.1} parent=43 // pred_check
          %p240 = pneg %p114
        $region46: #{tpu_custom_call.1} parent=43 // pred_check_branch
          %242 = sbr.rel (%p240) target = $region48
        $region47: #{tpu_custom_call.1} parent=43 // pred_region
          %s243 = sand.u32 %s99, 1
          %s244 = scalar_lea.sflag [#allocation6], %s243
          %s245 = sand.u32 %s99, 1
          %s246 = smul.addr %s245, 16
          %s247 = scalar_lea.vmem [#allocation7], %s246
          %249 = dma.done %s244, 256
        $region48: #{tpu_custom_call.1} parent=43 // pred_fallthru
          _
      $region44: #{tpu_custom_call.1} parent=5 // pred_fallthru
        _
    $region6: #{tpu_custom_call.1} parent=1 // loop_footer
      %s21 = sadd.s32 1, %s17
    $region7: #{tpu_custom_call.1} parent=1 // loop_footer_branch
      %16 = sbr.rel target = $region3
    $region8: #{tpu_custom_call.1} parent=1 // loop_exit
      _
    %250 = vsyncpa [#allocation5], 1
    %s251 = scalar_lea.sflag [#allocation5], 1
    %252 = vsyncpa %s251, 1
    %253 = vsyncpa [#allocation6], 1
    %s254 = scalar_lea.sflag [#allocation6], 1
    %255 = vsyncpa %s254, 1

</llo_original>
